<compile_context>
chip_gen: v7x
topology: tpu7x:2x2x1
jax: 0.10.0
libtpu: 0.0.40
codegen_flags: <defaults>
</compile_context>

<pallas_src>
import functools

import jax
import jax.numpy as jnp
from jax.experimental import pallas as pl
from jax.experimental.pallas import tpu as pltpu

_LANES = 128   # lane width: last dim of every tile
_SUB = 512     # rows per in-kernel sub-chunk (bounds elementwise temporaries)


def _aucm_kernel(yp_ref, yt_ref, out_ref, *, rows):
    """Per-block partial sums over a (TR, 128) tile of scores / labels.

    yp_ref : VMEM (TR, 128) scores (any float dtype; upcast to f32 per chunk)
    yt_ref : VMEM (TR, 128) labels (f32 / bf16 / int8; compared to 0 / 1)
    out_ref: VMEM (8, 128) f32 per-lane partial sums for this block
             rows: 0 sum(pos) | 1 sum(neg) | 2 sum(yp*pos) | 3 sum(yp*neg)
                   4 sum(yp^2*pos) | 5 sum(yp^2*neg) | 6,7 zero / unused
    rows   : static number of valid rows in the whole (un-padded) input
    """
    tr = yp_ref.shape[0]
    nblk = (rows + tr - 1) // tr           # static
    last_rows = rows - (nblk - 1) * tr     # static, in [1, tr]
    blk = pl.program_id(0)

    out_ref[...] = jnp.zeros_like(out_ref)

    def accumulate(start, size):
        yp = yp_ref[pl.ds(start, size), :].astype(jnp.float32)
        yt = yt_ref[pl.ds(start, size), :]
        pos = (yt == 1).astype(jnp.float32)
        neg = (yt == 0).astype(jnp.float32)
        yp_p = yp * pos
        yp_n = yp * neg
        out_ref[0:1, :] += jnp.sum(pos, axis=0, keepdims=True)
        out_ref[1:2, :] += jnp.sum(neg, axis=0, keepdims=True)
        out_ref[2:3, :] += jnp.sum(yp_p, axis=0, keepdims=True)
        out_ref[3:4, :] += jnp.sum(yp_n, axis=0, keepdims=True)
        out_ref[4:5, :] += jnp.sum(yp * yp_p, axis=0, keepdims=True)
        out_ref[5:6, :] += jnp.sum(yp * yp_n, axis=0, keepdims=True)

    def run(valid_rows):                   # valid_rows is a static Python int
        n_full = valid_rows // _SUB
        rem = valid_rows - n_full * _SUB
        if n_full > 0:
            @pl.loop(0, n_full)
            def _(c):
                accumulate(pl.multiple_of(c * _SUB, _SUB), _SUB)
        if rem:
            accumulate(n_full * _SUB, rem)

    if last_rows == tr:
        # Every block is fully in-bounds: single unmasked path, no branches.
        run(tr)
    else:
        # Only the final block is partial; it reads just its valid rows.
        @pl.when(blk < nblk - 1)
        def _():
            run(tr)

        @pl.when(blk == nblk - 1)
        def _():
            run(last_rows)


def aucm_loss(y_pred, y_true, a, b, alpha, margin=1.0, *, tr_max=8192):
    """Pallas implementation of AUCMLoss.forward (imratio=None path)."""
    y_pred = jnp.reshape(y_pred, (-1,))
    y_true = jnp.reshape(y_true, (-1,))
    n = y_pred.shape[0]
    rows = n // _LANES
    n_main = rows * _LANES
    tail = n - n_main

    stats = jnp.zeros((6,), jnp.float32)

    if rows > 0:
        if tail == 0:
            yp_main, yt_main = y_pred, y_true      # reshape below is a bitcast
        else:
            # TODO(synk): this prefix slice is one extra copy of the main part;
            # batch sizes that are multiples of 128 stay fully zero-copy.
            yp_main, yt_main = y_pred[:n_main], y_true[:n_main]
        yp2 = yp_main.reshape(rows, _LANES)
        yt2 = yt_main.reshape(rows, _LANES)

        # Row tile: as large as a ~16 MiB double-buffered input budget allows
        # (safe on all generations once scoped VMEM is raised to 32 MiB).
        # Multiple of _SUB when tiled; prefer an even block count so the
        # "parallel" grid axis splits evenly across v7x's two TensorCores.
        in_bytes_per_row = _LANES * (yp2.dtype.itemsize + yt2.dtype.itemsize)
        tr_budget = max(_SUB, (16 * 1024 * 1024) // (2 * in_bytes_per_row))
        tr = min(int(tr_max), rows, int(tr_budget))
        if tr < rows:
            tr = min(rows, max(_SUB, (tr // _SUB) * _SUB))
        num_blocks = -(-rows // tr)
        if tr < rows and num_blocks > 1 and num_blocks % 2 == 1:
            cand = -(-rows // (num_blocks + 1))
            cand = max(_SUB, -(-cand // _SUB) * _SUB)
            if cand < rows and (-(-rows // cand)) % 2 == 0:
                tr, num_blocks = cand, -(-rows // cand)

        item = yp2.dtype.itemsize + yt2.dtype.itemsize
        cost = pl.CostEstimate(
            flops=12 * n_main,
            transcendentals=0,
            bytes_accessed=n_main * item + num_blocks * 8 * _LANES * 4)

        partials = pl.pallas_call(
            functools.partial(_aucm_kernel, rows=rows),
            out_shape=jax.ShapeDtypeStruct((num_blocks, 8, _LANES), jnp.float32),
            grid=(num_blocks,),
            in_specs=[
                pl.BlockSpec((tr, _LANES), lambda i: (i, 0)),   # scores
                pl.BlockSpec((tr, _LANES), lambda i: (i, 0)),   # labels
            ],
            out_specs=pl.BlockSpec((None, 8, _LANES), lambda i: (i, 0, 0)),
            compiler_params=pltpu.CompilerParams(
                dimension_semantics=("parallel",),
                vmem_limit_bytes=32 * 1024 * 1024),
            cost_estimate=cost,
        )(yp2, yt2)
        stats = jnp.sum(partials[:, :6, :], axis=(0, 2))        # (6,)

    if tail:
        # <= 127 leftover elements: fold into the scalar math in plain JAX.
        yp_t = y_pred[n_main:].astype(jnp.float32)
        yt_t = y_true[n_main:]
        pos_t = (yt_t == 1).astype(jnp.float32)
        neg_t = (yt_t == 0).astype(jnp.float32)
        stats = stats + jnp.stack([
            jnp.sum(pos_t), jnp.sum(neg_t),
            jnp.sum(yp_t * pos_t), jnp.sum(yp_t * neg_t),
            jnp.sum(yp_t * yp_t * pos_t), jnp.sum(yp_t * yp_t * neg_t)])

    s_pos, s_neg = stats[0], stats[1]
    s_ypp, s_ypn = stats[2], stats[3]
    s_yp2p, s_yp2n = stats[4], stats[5]

    a = jnp.asarray(a, jnp.float32)
    b = jnp.asarray(b, jnp.float32)
    alpha = jnp.asarray(alpha, jnp.float32)
    margin = jnp.asarray(margin, jnp.float32)
    inv_n = jnp.float32(1.0 / n)

    p = s_pos * inv_n
    mean_sqa = (s_yp2p - 2.0 * a * s_ypp + a * a * s_pos) * inv_n
    mean_sqb = (s_yp2n - 2.0 * b * s_ypn + b * b * s_neg) * inv_n
    mean_cross = (p * s_ypn - (1.0 - p) * s_ypp) * inv_n

    loss = ((1.0 - p) * mean_sqa
            + p * mean_sqb
            + 2.0 * alpha * (p * (1.0 - p) * margin + mean_cross)
            - p * (1.0 - p) * alpha * alpha)
    return loss


def aucm_loss_ref(y_pred, y_true, a, b, alpha, margin=1.0):
    """Pure-JAX reference matching the PyTorch forward (imratio=None path)."""
    y_pred = jnp.reshape(y_pred, (-1, 1)).astype(jnp.float32)
    y_true = jnp.reshape(y_true, (-1, 1)).astype(jnp.float32)
    n = y_true.shape[0]
    p = jnp.sum(y_true == 1.0) / n
    pos = (y_true == 1.0).astype(jnp.float32)
    neg = (y_true == 0.0).astype(jnp.float32)
    return ((1 - p) * jnp.mean((y_pred - a) ** 2 * pos)
            + p * jnp.mean((y_pred - b) ** 2 * neg)
            + 2 * alpha * (p * (1 - p) * margin
                           + jnp.mean(p * y_pred * neg - (1 - p) * y_pred * pos))
            - p * (1 - p) * alpha ** 2)


if __name__ == "__main__":
    key = jax.random.PRNGKey(0)
    k1, k2, k3, k4, k5, k6 = jax.random.split(key, 6)

    a, b, alpha, margin = 0.6, 0.3, 0.4, 1.0

    # Test 1: f32 scores / f32 labels, N not a multiple of 128
    # (wrapper tail path + a single tiny full-extent block).
    n1 = 200
    yp1 = jax.random.uniform(k1, (n1,), dtype=jnp.float32)
    yt1 = (jax.random.uniform(k2, (n1,)) > 0.7).astype(jnp.float32)
    out1 = jax.block_until_ready(aucm_loss(yp1, yt1, a, b, alpha, margin))
    ref1 = aucm_loss_ref(yp1, yt1, a, b, alpha, margin)
    assert jnp.allclose(out1, ref1, rtol=2e-4, atol=2e-5), (out1, ref1)

    # Test 2: bf16 scores + int8 labels, multi-block grid with a partial last
    # block and a wrapper-handled tail (narrow dtypes, unmasked interior fast
    # path, static partial-last-block path, even block count).
    n2 = 128 * 1800 + 37
    yp2 = jax.random.uniform(k3, (n2,), dtype=jnp.float32).astype(jnp.bfloat16)
    yt2 = (jax.random.uniform(k4, (n2,)) > 0.7).astype(jnp.int8)
    out2 = jax.block_until_ready(
        aucm_loss(yp2, yt2, a, b, alpha, margin, tr_max=512))
    ref2 = aucm_loss_ref(yp2, yt2, a, b, alpha, margin)
    assert jnp.allclose(out2, ref2, rtol=2e-4, atol=2e-5), (out2, ref2)

    # Test 3: f32 / f32, N a multiple of 128 -> fully zero-copy path, single
    # full block, exercises the in-kernel sub-chunk loop.
    n3 = 128 * 1024
    yp3 = jax.random.uniform(k5, (n3,), dtype=jnp.float32)
    yt3 = (jax.random.uniform(k6, (n3,)) > 0.5).astype(jnp.float32)
    out3 = jax.block_until_ready(aucm_loss(yp3, yt3, a, b, alpha, margin))
    ref3 = aucm_loss_ref(yp3, yt3, a, b, alpha, margin)
    assert jnp.allclose(out3, ref3, rtol=2e-4, atol=2e-5), (out3, ref3)

    print("KERNEL_OK")
</pallas_src>

<mosaic_0001>
module attributes {stable_mosaic.version = 11 : i64} {
  func.func @_aucm_kernel(%arg0: i32, %arg1: memref<1x128xf32, #tpu.memory_space<vmem>>, %arg2: memref<1x128xf32, #tpu.memory_space<vmem>>, %arg3: memref<1x8x128xf32, #tpu.memory_space<vmem>>) attributes {dimension_semantics = [#tpu.dimension_semantics<parallel>], iteration_bounds = array<i64: 1>, scalar_prefetch = 0 : i64, scratch_operands = 0 : i64, tpu.core_type = #tpu.core_type<tc>, window_params = [{transform_indices = @transform_0, window_bounds = array<i64: 1, 128>}, {transform_indices = @transform_1, window_bounds = array<i64: 1, 128>}, {transform_indices = @transform_2, window_bounds = array<i64: 1, 8, 128>}]} {
    %cst = arith.constant 0.000000e+00 : f32
    %0 = vector.broadcast %cst : f32 to vector<8x128xf32>
    %c0 = arith.constant 0 : index
    %c0_0 = arith.constant 0 : index
    %c0_1 = arith.constant 0 : index
    %1 = vector.load %arg3[%c0, %c0_0, %c0_1] : memref<1x8x128xf32, #tpu.memory_space<vmem>>, vector<1x8x128xf32>
    %2 = vector.shape_cast %1 : vector<1x8x128xf32> to vector<8x128xf32>
    %3 = vector.shape_cast %0 : vector<8x128xf32> to vector<1x8x128xf32>
    tpu.vector_store %arg3[%c0, %c0_0, %c0_1], %3 {strides = array<i32>} : memref<1x8x128xf32, #tpu.memory_space<vmem>>, vector<1x8x128xf32>,
    %c0_2 = arith.constant 0 : index
    %c0_3 = arith.constant 0 : index
    %4 = vector.load %arg1[%c0_2, %c0_3] : memref<1x128xf32, #tpu.memory_space<vmem>>, vector<1x128xf32>
    %c0_4 = arith.constant 0 : index
    %c0_5 = arith.constant 0 : index
    %5 = vector.load %arg2[%c0_4, %c0_5] : memref<1x128xf32, #tpu.memory_space<vmem>>, vector<1x128xf32>
    %cst_6 = arith.constant 1.000000e+00 : f32
    %6 = vector.broadcast %cst_6 : f32 to vector<1x128xf32>
    %7 = arith.cmpf oeq, %5, %6 : vector<1x128xf32>
    %8 = arith.extui %7 : vector<1x128xi1> to vector<1x128xi32>
    %9 = arith.sitofp %8 : vector<1x128xi32> to vector<1x128xf32>
    %cst_7 = arith.constant 0.000000e+00 : f32
    %10 = vector.broadcast %cst_7 : f32 to vector<1x128xf32>
    %11 = arith.cmpf oeq, %5, %10 : vector<1x128xf32>
    %12 = arith.extui %11 : vector<1x128xi1> to vector<1x128xi32>
    %13 = arith.sitofp %12 : vector<1x128xi32> to vector<1x128xf32>
    %14 = arith.mulf %4, %9 : vector<1x128xf32>
    %15 = arith.mulf %4, %13 : vector<1x128xf32>
    %c0_8 = arith.constant 0 : index
    %c0_9 = arith.constant 0 : index
    %c0_10 = arith.constant 0 : index
    %16 = vector.load %arg3[%c0_8, %c0_9, %c0_10] : memref<1x8x128xf32, #tpu.memory_space<vmem>>, vector<1x1x128xf32>
    %17 = vector.shape_cast %16 : vector<1x1x128xf32> to vector<1x128xf32>
    %cst_11 = arith.constant dense<0.000000e+00> : vector<128xf32>
    %18 = vector.multi_reduction <add>, %9, %cst_11 [0] : vector<1x128xf32> to vector<128xf32>
    %19 = vector.shape_cast %18 : vector<128xf32> to vector<1x128xf32>
    %20 = arith.addf %17, %19 : vector<1x128xf32>
    %c0_12 = arith.constant 0 : index
    %c0_13 = arith.constant 0 : index
    %c0_14 = arith.constant 0 : index
    %21 = vector.load %arg3[%c0_12, %c0_13, %c0_14] : memref<1x8x128xf32, #tpu.memory_space<vmem>>, vector<1x1x128xf32>
    %22 = vector.shape_cast %21 : vector<1x1x128xf32> to vector<1x128xf32>
    %23 = vector.shape_cast %20 : vector<1x128xf32> to vector<1x1x128xf32>
    tpu.vector_store %arg3[%c0_12, %c0_13, %c0_14], %23 {strides = array<i32>} : memref<1x8x128xf32, #tpu.memory_space<vmem>>, vector<1x1x128xf32>,
    %c0_15 = arith.constant 0 : index
    %c1 = arith.constant 1 : index
    %c0_16 = arith.constant 0 : index
    %24 = vector.load %arg3[%c0_15, %c1, %c0_16] : memref<1x8x128xf32, #tpu.memory_space<vmem>>, vector<1x1x128xf32>
    %25 = vector.shape_cast %24 : vector<1x1x128xf32> to vector<1x128xf32>
    %cst_17 = arith.constant dense<0.000000e+00> : vector<128xf32>
    %26 = vector.multi_reduction <add>, %13, %cst_17 [0] : vector<1x128xf32> to vector<128xf32>
    %27 = vector.shape_cast %26 : vector<128xf32> to vector<1x128xf32>
    %28 = arith.addf %25, %27 : vector<1x128xf32>
    %c0_18 = arith.constant 0 : index
    %c1_19 = arith.constant 1 : index
    %c0_20 = arith.constant 0 : index
    %29 = vector.load %arg3[%c0_18, %c1_19, %c0_20] : memref<1x8x128xf32, #tpu.memory_space<vmem>>, vector<1x1x128xf32>
    %30 = vector.shape_cast %29 : vector<1x1x128xf32> to vector<1x128xf32>
    %31 = vector.shape_cast %28 : vector<1x128xf32> to vector<1x1x128xf32>
    tpu.vector_store %arg3[%c0_18, %c1_19, %c0_20], %31 {strides = array<i32>} : memref<1x8x128xf32, #tpu.memory_space<vmem>>, vector<1x1x128xf32>,
    %c0_21 = arith.constant 0 : index
    %c2 = arith.constant 2 : index
    %c0_22 = arith.constant 0 : index
    %32 = vector.load %arg3[%c0_21, %c2, %c0_22] : memref<1x8x128xf32, #tpu.memory_space<vmem>>, vector<1x1x128xf32>
    %33 = vector.shape_cast %32 : vector<1x1x128xf32> to vector<1x128xf32>
    %cst_23 = arith.constant dense<0.000000e+00> : vector<128xf32>
    %34 = vector.multi_reduction <add>, %14, %cst_23 [0] : vector<1x128xf32> to vector<128xf32>
    %35 = vector.shape_cast %34 : vector<128xf32> to vector<1x128xf32>
    %36 = arith.addf %33, %35 : vector<1x128xf32>
    %c0_24 = arith.constant 0 : index
    %c2_25 = arith.constant 2 : index
    %c0_26 = arith.constant 0 : index
    %37 = vector.load %arg3[%c0_24, %c2_25, %c0_26] : memref<1x8x128xf32, #tpu.memory_space<vmem>>, vector<1x1x128xf32>
    %38 = vector.shape_cast %37 : vector<1x1x128xf32> to vector<1x128xf32>
    %39 = vector.shape_cast %36 : vector<1x128xf32> to vector<1x1x128xf32>
    tpu.vector_store %arg3[%c0_24, %c2_25, %c0_26], %39 {strides = array<i32>} : memref<1x8x128xf32, #tpu.memory_space<vmem>>, vector<1x1x128xf32>,
    %c0_27 = arith.constant 0 : index
    %c3 = arith.constant 3 : index
    %c0_28 = arith.constant 0 : index
    %40 = vector.load %arg3[%c0_27, %c3, %c0_28] : memref<1x8x128xf32, #tpu.memory_space<vmem>>, vector<1x1x128xf32>
    %41 = vector.shape_cast %40 : vector<1x1x128xf32> to vector<1x128xf32>
    %cst_29 = arith.constant dense<0.000000e+00> : vector<128xf32>
    %42 = vector.multi_reduction <add>, %15, %cst_29 [0] : vector<1x128xf32> to vector<128xf32>
    %43 = vector.shape_cast %42 : vector<128xf32> to vector<1x128xf32>
    %44 = arith.addf %41, %43 : vector<1x128xf32>
    %c0_30 = arith.constant 0 : index
    %c3_31 = arith.constant 3 : index
    %c0_32 = arith.constant 0 : index
    %45 = vector.load %arg3[%c0_30, %c3_31, %c0_32] : memref<1x8x128xf32, #tpu.memory_space<vmem>>, vector<1x1x128xf32>
    %46 = vector.shape_cast %45 : vector<1x1x128xf32> to vector<1x128xf32>
    %47 = vector.shape_cast %44 : vector<1x128xf32> to vector<1x1x128xf32>
    tpu.vector_store %arg3[%c0_30, %c3_31, %c0_32], %47 {strides = array<i32>} : memref<1x8x128xf32, #tpu.memory_space<vmem>>, vector<1x1x128xf32>,
    %c0_33 = arith.constant 0 : index
    %c4 = arith.constant 4 : index
    %c0_34 = arith.constant 0 : index
    %48 = vector.load %arg3[%c0_33, %c4, %c0_34] : memref<1x8x128xf32, #tpu.memory_space<vmem>>, vector<1x1x128xf32>
    %49 = vector.shape_cast %48 : vector<1x1x128xf32> to vector<1x128xf32>
    %50 = arith.mulf %4, %14 : vector<1x128xf32>
    %cst_35 = arith.constant dense<0.000000e+00> : vector<128xf32>
    %51 = vector.multi_reduction <add>, %50, %cst_35 [0] : vector<1x128xf32> to vector<128xf32>
    %52 = vector.shape_cast %51 : vector<128xf32> to vector<1x128xf32>
    %53 = arith.addf %49, %52 : vector<1x128xf32>
    %c0_36 = arith.constant 0 : index
    %c4_37 = arith.constant 4 : index
    %c0_38 = arith.constant 0 : index
    %54 = vector.load %arg3[%c0_36, %c4_37, %c0_38] : memref<1x8x128xf32, #tpu.memory_space<vmem>>, vector<1x1x128xf32>
    %55 = vector.shape_cast %54 : vector<1x1x128xf32> to vector<1x128xf32>
    %56 = vector.shape_cast %53 : vector<1x128xf32> to vector<1x1x128xf32>
    tpu.vector_store %arg3[%c0_36, %c4_37, %c0_38], %56 {strides = array<i32>} : memref<1x8x128xf32, #tpu.memory_space<vmem>>, vector<1x1x128xf32>,
    %c0_39 = arith.constant 0 : index
    %c5 = arith.constant 5 : index
    %c0_40 = arith.constant 0 : index
    %57 = vector.load %arg3[%c0_39, %c5, %c0_40] : memref<1x8x128xf32, #tpu.memory_space<vmem>>, vector<1x1x128xf32>
    %58 = vector.shape_cast %57 : vector<1x1x128xf32> to vector<1x128xf32>
    %59 = arith.mulf %4, %15 : vector<1x128xf32>
    %cst_41 = arith.constant dense<0.000000e+00> : vector<128xf32>
    %60 = vector.multi_reduction <add>, %59, %cst_41 [0] : vector<1x128xf32> to vector<128xf32>
    %61 = vector.shape_cast %60 : vector<128xf32> to vector<1x128xf32>
    %62 = arith.addf %58, %61 : vector<1x128xf32>
    %c0_42 = arith.constant 0 : index
    %c5_43 = arith.constant 5 : index
    %c0_44 = arith.constant 0 : index
    %63 = vector.load %arg3[%c0_42, %c5_43, %c0_44] : memref<1x8x128xf32, #tpu.memory_space<vmem>>, vector<1x1x128xf32>
    %64 = vector.shape_cast %63 : vector<1x1x128xf32> to vector<1x128xf32>
    %65 = vector.shape_cast %62 : vector<1x128xf32> to vector<1x1x128xf32>
    tpu.vector_store %arg3[%c0_42, %c5_43, %c0_44], %65 {strides = array<i32>} : memref<1x8x128xf32, #tpu.memory_space<vmem>>, vector<1x1x128xf32>,
    return
  }
  func.func @transform_0(%arg0: i32) -> (i32, i32) {
    %c0_i32 = arith.constant 0 : i32
    %c0_i32_0 = arith.constant 0 : i32
    return %arg0, %c0_i32 : i32, i32
  }
  func.func @transform_1(%arg0: i32) -> (i32, i32) {
    %c0_i32 = arith.constant 0 : i32
    %c0_i32_0 = arith.constant 0 : i32
    return %arg0, %c0_i32 : i32, i32
  }
  func.func @transform_2(%arg0: i32) -> (i32, i32, i32) {
    %c0_i32 = arith.constant 0 : i32
    %c0_i32_0 = arith.constant 0 : i32
    %c0_i32_1 = arith.constant 0 : i32
    return %arg0, %c0_i32, %c0_i32_0 : i32, i32, i32
  }
}

</mosaic_0001>

<llo_original>
// kernel: tpu_custom_call.1
$region0: #{tpu_custom_call.1}
  #allocation0 [shape = 'u32[]', space=smem, size = 0x4, offset = 0x4, fixed_abs, tag = 'smem constant byte address 0x4 - core index']
  #allocation1 [shape = 'u32[144,128]{1,0:T(1,128)}', space=vmem, size = 0x12000, scoped, tag = 'internal scratch']
  %s0 = inlined_call_operand.hbm [shape: f32[1,128], index: 0, kind: input, shape index: {}]
  %s1 = inlined_call_operand.vmem [shape: f32[1,128], index: 1, kind: input, shape index: {}]
  %s2 = inlined_call_operand.hbm [shape: f32[1,8,128], index: 2, kind: output, shape index: {}]
  %s3 = sld [smem:[#allocation0]]
  $region22: #{tpu_custom_call.1} parent=0
    _
  %s5 = ssub.s32 1, %s3
  %s6 = scalar_select 0, %s5, %s3
  $region1: #{tpu_custom_call.1} parent=0
    #allocation2 [shape = 'u8[512]{0}', space=vmem, size = 0x400, scoped, tag = 'input window, operand 0, single buffered']
    #allocation3 [shape = 's32[1]{0}', space=sflag, size = 0x4, scoped, tag = 'scoped memory for tpu_custom_call.1']
    #allocation4 [shape = 's32[1]{0}', space=sflag, size = 0x4, scoped, tag = 'scoped memory for tpu_custom_call.1']
    #allocation5 [shape = 'u8[4096]{0}', space=vmem, size = 0x1000, scoped, tag = 'output window, operand 0, single buffered']
    %7 = vsyncpa [#allocation3], 0
    %8 = vsyncpa [#allocation4], 0
    // Predicated region
    $region2: #{tpu_custom_call.1} parent=1 // pred_check
      _
    $region3: #{tpu_custom_call.1} parent=1 // pred_check_branch
      %10 = sbr.rel (0) target = $region5
    $region4: #{tpu_custom_call.1} parent=1 // pred_region
      %s12 = ssub.s32 16, 16
      %13 = vsyncadd [#allocation3], %s12
      %s15 = sshll.u32 [#allocation2], 4
      %s16 = int_to_ptr.vmem [resolvable:$true] %s15
      %18 = dma.hbm_to_vmem [thread:$0]  %s0, 16, %s16, [#allocation3]
    $region5: #{tpu_custom_call.1} parent=1 // pred_fallthru
      _
    // Predicated region
    $region6: #{tpu_custom_call.1} parent=1 // pred_check
      _
    $region7: #{tpu_custom_call.1} parent=1 // pred_check_branch
      %20 = sbr.rel (0) target = $region9
    $region8: #{tpu_custom_call.1} parent=1 // pred_region
      _
    $region9: #{tpu_custom_call.1} parent=1 // pred_fallthru
      _
    // Predicated region
    $region10: #{tpu_custom_call.1} parent=1 // pred_check
      _
    $region11: #{tpu_custom_call.1} parent=1 // pred_check_branch
      %22 = sbr.rel (0) target = $region13
    $region12: #{tpu_custom_call.1} parent=1 // pred_region
      %23 = dma.done [#allocation3], 16
    $region13: #{tpu_custom_call.1} parent=1 // pred_fallthru
      _
    %24 = vst [vmem:[#allocation5] sm:$0xff] 0.0
    %v25 = vld [vmem:[#allocation2] sm:$0x1]
    %v26 = vld [vmem:[%s1] sm:$0x1]
    %vm27 = vcmp.eq.f32.partialorder %v26, 1.0
    %v28 = vsel %vm27, 1, 0
    %v29 = vcvt.s32.f32 %v28
    %vm30 = vcmp.eq.f32.partialorder %v26, 0.0
    %v31 = vsel %vm30, 1, 0
    %v32 = vcvt.s32.f32 %v31
    %v33 = vmul.f32 %v25, %v29
    %v34 = vmul.f32 %v25, %v32
    %v35 = vld [vmem:[#allocation5] sm:$0x1]
    %v36 = vadd.f32 %v29, 0.0
    %v37 = vadd.f32 %v35, %v36
    %38 = vst [vmem:[#allocation5] sm:$0x1] %v37
    %v39 = vld [vmem:[#allocation5 + $0x1] sm:$0x1]
    %v40 = vadd.f32 %v32, 0.0
    %v41 = vadd.f32 %v39, %v40
    %42 = vst [vmem:[#allocation5 + $0x1] sm:$0x1] %v41
    %v43 = vld [vmem:[#allocation5 + $0x2] sm:$0x1]
    %v44 = vadd.f32 %v33, 0.0
    %v45 = vadd.f32 %v43, %v44
    %46 = vst [vmem:[#allocation5 + $0x2] sm:$0x1] %v45
    %v47 = vld [vmem:[#allocation5 + $0x3] sm:$0x1]
    %v48 = vadd.f32 %v34, 0.0
    %v49 = vadd.f32 %v47, %v48
    %50 = vst [vmem:[#allocation5 + $0x3] sm:$0x1] %v49
    %v51 = vld [vmem:[#allocation5 + $0x4] sm:$0x1]
    %v52 = vmul.f32 %v25, %v33
    %v53 = vadd.f32 %v52, 0.0
    %v54 = vadd.f32 %v51, %v53
    %55 = vst [vmem:[#allocation5 + $0x4] sm:$0x1] %v54
    %v56 = vld [vmem:[#allocation5 + $0x5] sm:$0x1]
    %v57 = vmul.f32 %v25, %v34
    %v58 = vadd.f32 %v57, 0.0
    %v59 = vadd.f32 %v56, %v58
    %60 = vst [vmem:[#allocation5 + $0x5] sm:$0x1] %v59
    // Predicated region
    $region14: #{tpu_custom_call.1} parent=1 // pred_check
      _
    $region15: #{tpu_custom_call.1} parent=1 // pred_check_branch
      %62 = sbr.rel (0) target = $region17
    $region16: #{tpu_custom_call.1} parent=1 // pred_region
      %s64 = ssub.s32 128, 128
      %65 = vsyncadd [#allocation4], %s64
      %s67 = sshll.u32 [#allocation5], 4
      %s68 = int_to_ptr.vmem [resolvable:$true] %s67
      %70 = dma.vmem_to_hbm [thread:$0]  %s68, 128, %s2, [#allocation4]
    $region17: #{tpu_custom_call.1} parent=1 // pred_fallthru
      _
    // Predicated region
    $region18: #{tpu_custom_call.1} parent=1 // pred_check
      _
    $region19: #{tpu_custom_call.1} parent=1 // pred_check_branch
      %72 = sbr.rel (0) target = $region21
    $region20: #{tpu_custom_call.1} parent=1 // pred_region
      %73 = dma.done [#allocation4], 128
    $region21: #{tpu_custom_call.1} parent=1 // pred_fallthru
      _
    %74 = vsyncpa [#allocation3], 1
    %75 = vsyncpa [#allocation4], 1

</llo_original>
